<compile_context>
chip_gen: v7x
topology: tpu7x:2x2x1
jax: 0.10.0
libtpu: 0.0.40
codegen_flags: <defaults>
</compile_context>

<pallas_src>
import jax
import jax.numpy as jnp
from jax.experimental import pallas as pl
from jax.experimental.pallas import tpu as pltpu


def _hbm_identity_kernel(x_hbm_ref, o_hbm_ref, copy_sem):
    # Single whole-array HBM->HBM DMA: start it, wait for completion.
    # (For truly enormous arrays this could be chunked into a few large
    # copies along the leading axis, but a single DMA already runs at the
    # HBM roofline for the sizes handled here.)
    copy = pltpu.make_async_copy(x_hbm_ref, o_hbm_ref, copy_sem)
    copy.start()
    copy.wait()


def _pallas_identity(x: jnp.ndarray) -> jnp.ndarray:
    """Identity realised as one HBM->HBM DMA inside a Pallas kernel."""
    if x.size == 0:
        return x
    itemsize = jnp.dtype(x.dtype).itemsize
    return pl.pallas_call(
        _hbm_identity_kernel,
        out_shape=jax.ShapeDtypeStruct(x.shape, x.dtype),
        in_specs=[pl.BlockSpec(memory_space=pl.ANY)],
        out_specs=pl.BlockSpec(memory_space=pl.ANY),
        scratch_shapes=[pltpu.SemaphoreType.DMA],
        cost_estimate=pl.CostEstimate(
            flops=0,
            transcendentals=0,
            bytes_accessed=2 * int(x.size) * itemsize,
        ),
    )(x)


class DimRed:
    """JAX/Pallas port of vschaos.modules.dimred.DimRed (abstract base)."""

    def __init__(self, **kwargs):
        # Base class declares no parameters.  The review's top recommendation
        # is that the identity should cost nothing; pass
        # skip_identity_kernel=True to get a literal `return x`.  The default
        # keeps the on-TPU Pallas (DMA) data path so the no-op is still
        # exercised as a kernel.
        self._skip_identity_kernel = bool(kwargs.get("skip_identity_kernel", False))

    def fit(self, x: jnp.ndarray):
        # Base class fit is a no-op.
        pass

    def forward(self, x: jnp.ndarray) -> jnp.ndarray:
        # Base class forward applies no transform.
        if self._skip_identity_kernel:
            return x
        return _pallas_identity(x)

    def __call__(self, x: jnp.ndarray) -> jnp.ndarray:
        return self.forward(x)

    def invert(self, x: jnp.ndarray) -> jnp.ndarray:
        # Base class invert is also a no-op; same identity path.
        if self._skip_identity_kernel:
            return x
        return _pallas_identity(x)


if __name__ == "__main__":
    key = jax.random.PRNGKey(0)
    # Small NCHW input consistent with vschaos usage: (B, C, H, W).
    x = jax.random.normal(key, (2, 4, 16, 16), dtype=jnp.float32)

    module = DimRed()
    module.fit(x)                      # no-op, as in the reference module
    y = module(x)                      # forward through the Pallas DMA kernel
    z = module.invert(y)               # no-op inverse through the kernel

    y = jax.block_until_ready(y)
    z = jax.block_until_ready(z)

    assert y.shape == x.shape and y.dtype == x.dtype
    assert bool(jnp.allclose(y, x)) and bool(jnp.allclose(z, x))

    # Exercise a larger, raggedly-shaped tensor as well: the DMA form needs
    # no padding, reshaping or output slicing for arbitrary shapes.
    big = jax.random.normal(key, (3, 7, 311, 129), dtype=jnp.float32)
    big_y = jax.block_until_ready(module(big))
    assert big_y.shape == big.shape and bool(jnp.allclose(big_y, big))

    # The gated, literally-free identity configuration (review item #1).
    fast = DimRed(skip_identity_kernel=True)
    assert fast(x) is x and fast.invert(x) is x

    print("KERNEL_OK")
</pallas_src>

<mosaic_0001>
module attributes {stable_mosaic.version = 11 : i64} {
  func.func @_hbm_identity_kernel(%arg0: memref<2x4x16x16xf32, #tpu.memory_space<any>>, %arg1: memref<2x4x16x16xf32, #tpu.memory_space<any>>, %arg2: memref<!tpu.dma_semaphore, #tpu.memory_space<semaphore_mem>>) attributes {dimension_semantics = [], scalar_prefetch = 0 : i64, scratch_operands = 1 : i64, tpu.core_type = #tpu.core_type<tc>} {
    tpu.enqueue_dma source(%arg0 : memref<2x4x16x16xf32, #tpu.memory_space<any>>) target(%arg1 : memref<2x4x16x16xf32, #tpu.memory_space<any>>) target_semaphore(%arg2 : memref<!tpu.dma_semaphore, #tpu.memory_space<semaphore_mem>>)
    tpu.wait_dma2 semaphore(%arg2 : memref<!tpu.dma_semaphore, #tpu.memory_space<semaphore_mem>>) src(%arg0 : memref<2x4x16x16xf32, #tpu.memory_space<any>>) dst(%arg1 : memref<2x4x16x16xf32, #tpu.memory_space<any>>)
    return
  }
}

</mosaic_0001>

<llo_original>
// kernel: tpu_custom_call.1
$region0: #{tpu_custom_call.1}
  #allocation0 [shape = 'u32[]', space=smem, size = 0x4, offset = 0x4, fixed_abs, tag = 'smem constant byte address 0x4 - core index']
  #allocation1 [shape = 'u32[144,128]{1,0:T(1,128)}', space=vmem, size = 0x12000, scoped, tag = 'internal scratch']
  #allocation2 [shape = 's32[1]{0}', space=sflag, size = 0x4, scoped, tag = 'scratch operand']
  #allocation3 [shape = 's32[]', space=sflag, size = 0x4, offset = 0, fixed_abs, tag = 'sflag constant byte address 0x0 - dummy sync flag']
  #allocation4 [shape = 'u32[0]{0}', space=smem, size = 0, offset = 0, fixed_abs, tag = 'smem constant byte address 0x0 - null']
  %s0 = inlined_call_operand.hbm [shape: f32[2,4,16,16], index: 0, kind: input, shape index: {}]
  %s1 = inlined_call_operand.hbm [shape: f32[2,4,16,16], index: 1, kind: output, shape index: {}]
  %s2 = sld [smem:[#allocation0]]
  $region2: #{tpu_custom_call.1} parent=0
    _
  %s4 = ssub.s32 1, %s2
  %s5 = scalar_select 0, %s4, %s2
  %s7 = sshll.u32 1, 14
  %s8 = sxor.u32 4294967295, %s7
  %s11 = sshll.u32 3, 24
  %s12 = sxor.u32 4294967295, %s11
  %s13 = sand.u32 0, %s12
  %s15 = sor.u32 %s13, 0
  %18 = dma.general %s0, 2048, %s1, [#allocation2], [#allocation3], [#allocation4], %s15, 0
  %s19 = smul.u32 2, 4
  %s20 = smul.u32 %s19, 16
  %s21 = smul.u32 %s20, 1
  %s22 = sshll.u32 %s21, 4
  %23 = dma.done [#allocation2], %s22
  %24 = vsyncmov [#allocation2]
  %s25 = vpop.sfrf %24
  %p26 = scmp.eq.s32.totalorder %s25, 0
  %p27 = pneg %p26
  %29 = shalt.err (%p27)

</llo_original>
